<compile_context>
chip_gen: v7x
topology: tpu7x:2x2x1
jax: 0.10.0
libtpu: 0.0.40
codegen_flags: <defaults>
</compile_context>

<pallas_src>
from typing import NamedTuple, Optional

import jax
import jax.numpy as jnp
from jax.experimental import pallas as pl
from jax.experimental.pallas import tpu as pltpu


class EmbedReturn(NamedTuple):
    emb: Optional[jax.Array] = None
    time_emb: Optional[jax.Array] = None
    style: Optional[jax.Array] = None


def _round_up(x: int, m: int) -> int:
    return (x + m - 1) // m * m


def _time_embed_kernel(t_ref, w1_ref, b1_ref, w2_ref, b2_ref, out_ref):
    # Linear1 on the MXU (f32 operands, f32 accumulation).
    h = jnp.dot(t_ref[...], w1_ref[...], preferred_element_type=jnp.float32)
    # Bias + SiLU in f32: VPU add/mul + EUP sigmoid (separate bundle slots).
    h = h + b1_ref[...]
    h = h * jax.nn.sigmoid(h)
    # Linear2 on the MXU + bias.
    out = jnp.dot(h.astype(w2_ref.dtype), w2_ref[...],
                  preferred_element_type=jnp.float32)
    out = out + b2_ref[...]
    # Weights may be lane-padded (To -> Top); write only the real columns when
    # the output buffer is unpadded (single-block small-shape path).
    out_ref[...] = out[:, : out_ref.shape[1]].astype(out_ref.dtype)


def time_embed_pallas(time_emb, w1p, b1p, w2p, b2p, to_out, *, batch_tile=1024):
    """2-layer SiLU MLP (the nn.Sequential `time_embed`) as one Pallas call.

    time_emb: [B, Tc] activations.
    w1p: [Tc, Top], w2p: [Top, Top], b1p/b2p: [1, Top] -- f32 weights/biases
    zero-padded once at module init (To -> Top, multiple of 128).
    to_out: real (unpadded) output width To.  Returns [B, To] in time_emb.dtype.
    """
    B, Tc = time_emb.shape
    tc_w, Top = w1p.shape
    assert Tc == tc_w, "activation feature dim must match w1"
    out_dtype = time_emb.dtype

    n_b = 1 if B <= batch_tile else pl.cdiv(B, batch_tile)

    cost = pl.CostEstimate(
        flops=2 * B * Tc * Top + 2 * B * Top * Top,
        transcendentals=B * Top,
        bytes_accessed=4 * (B * Tc + Tc * Top + Top * Top + 2 * Top
                            + B * to_out),
    )

    if n_b == 1:
        # Single block, no grid, no padding/slicing around the call: block
        # shapes equal the full array dims (allowed regardless of (8,128)),
        # and the output is written unpadded straight to (B, To).
        full = lambda shape: pl.BlockSpec(shape, lambda: (0,) * len(shape))
        call = pl.pallas_call(
            _time_embed_kernel,
            out_shape=jax.ShapeDtypeStruct((B, to_out), out_dtype),
            in_specs=[full((B, Tc)), full((Tc, Top)), full((1, Top)),
                      full((Top, Top)), full((1, Top))],
            out_specs=full((B, to_out)),
            cost_estimate=cost,
        )
        return call(time_emb, w1p, b1p, w2p, b2p)

    # Gridded path for large B: tile only the batch (sublane) axis, keep the
    # weights resident (constant index map, single-buffered), keep the output
    # lane-dense (Top) so stores are unmasked, and pad B by < tile_b rows.
    tile_b = _round_up(pl.cdiv(B, n_b), 8)
    Bp = n_b * tile_b
    xp = time_emb if Bp == B else jnp.pad(time_emb, ((0, Bp - B), (0, 0)))

    def resident(shape):
        # Block never changes across the grid -> no double buffering needed.
        return pl.BlockSpec(shape, lambda i: (0, 0),
                            pipeline_mode=pl.Buffered(1))

    call = pl.pallas_call(
        _time_embed_kernel,
        out_shape=jax.ShapeDtypeStruct((Bp, Top), out_dtype),
        grid=(n_b,),
        in_specs=[pl.BlockSpec((tile_b, Tc), lambda i: (i, 0)),
                  resident((Tc, Top)), resident((1, Top)),
                  resident((Top, Top)), resident((1, Top))],
        out_specs=pl.BlockSpec((tile_b, Top), lambda i: (i, 0)),
        compiler_params=pltpu.CompilerParams(
            dimension_semantics=("parallel",)),
        cost_estimate=cost,
    )
    out = call(xp, w1p, b1p, w2p, b2p)
    return out[:B, :to_out]


class TimeStyleSeperateEmbed:
    """JAX/Pallas port of model/unet_autoenc.py::TimeStyleSeperateEmbed."""

    def __init__(self, time_channels, time_out_channels, key):
        k1, k2, k3, k4 = jax.random.split(key, 4)
        Tc, To = time_channels, time_out_channels
        s1 = 1.0 / jnp.sqrt(Tc)
        s2 = 1.0 / jnp.sqrt(To)
        # PyTorch nn.Linear init; weights stored transposed [in, out] so the
        # kernel computes x @ W + b (== x @ W_pt.T + b).  Kept f32 for parity.
        w1 = jax.random.uniform(k1, (Tc, To), jnp.float32, -s1, s1)
        b1 = jax.random.uniform(k2, (To,), jnp.float32, -s1, s1)
        w2 = jax.random.uniform(k3, (To, To), jnp.float32, -s2, s2)
        b2 = jax.random.uniform(k4, (To,), jnp.float32, -s2, s2)

        # One-time lane padding (To -> multiple of 128), hoisted out of the
        # per-call path.  Zero padding is exact: padded hidden columns get
        # zero weight + zero bias, SiLU(0) = 0, and padded output columns are
        # never written back / are sliced off.
        Top = _round_up(To, 128)
        self.time_channels = Tc
        self.time_out_channels = To
        self.w1p = jnp.pad(w1, ((0, 0), (0, Top - To)))
        self.b1p = jnp.pad(b1.reshape(1, To), ((0, 0), (0, Top - To)))
        self.w2p = jnp.pad(w2, ((0, Top - To), (0, Top - To)))
        self.b2p = jnp.pad(b2.reshape(1, To), ((0, 0), (0, Top - To)))
        # Unpadded copies kept only for the reference check in __main__.
        self.w1, self.b1, self.w2, self.b2 = w1, b1, w2, b2

    def __call__(self, time_emb=None, cond=None, **kwargs):
        if time_emb is None:
            t_out = None
        else:
            t_out = time_embed_pallas(time_emb, self.w1p, self.b1p,
                                      self.w2p, self.b2p,
                                      self.time_out_channels)
        style = cond  # nn.Identity
        return EmbedReturn(emb=style, time_emb=t_out, style=style)


if __name__ == "__main__":
    key = jax.random.PRNGKey(0)
    k_mod, k_t, k_c, k_t2 = jax.random.split(key, 4)

    B = 2
    time_channels = 32
    time_out_channels = 64
    cond_dim = 128

    module = TimeStyleSeperateEmbed(time_channels, time_out_channels, k_mod)

    time_emb = jax.random.normal(k_t, (B, time_channels), jnp.float32)
    cond = jax.random.normal(k_c, (B, cond_dim), jnp.float32)

    out = module(time_emb=time_emb, cond=cond)
    jax.block_until_ready(out.time_emb)
    jax.block_until_ready(out.style)

    def ref_mlp(x):
        h = x @ module.w1 + module.b1
        h = h * jax.nn.sigmoid(h)
        return h @ module.w2 + module.b2

    ref = ref_mlp(time_emb)
    assert out.time_emb.shape == (B, time_out_channels)
    assert out.time_emb.dtype == time_emb.dtype
    assert jnp.allclose(out.time_emb, ref, atol=1e-2, rtol=1e-2)
    assert out.style is cond and out.emb is cond

    # time_emb=None path (module keeps returning None for time_emb).
    out_none = module(time_emb=None, cond=cond)
    assert out_none.time_emb is None and out_none.style is cond

    # Exercise the gridded large-batch path (batch tiling, resident weights,
    # minimal row padding).
    B2 = 272
    time_emb2 = jax.random.normal(k_t2, (B2, time_channels), jnp.float32)
    out2 = time_embed_pallas(time_emb2, module.w1p, module.b1p,
                             module.w2p, module.b2p,
                             time_out_channels, batch_tile=128)
    jax.block_until_ready(out2)
    ref2 = ref_mlp(time_emb2)
    assert out2.shape == (B2, time_out_channels)
    assert out2.dtype == time_emb2.dtype
    assert jnp.allclose(out2, ref2, atol=1e-2, rtol=1e-2)

    print("KERNEL_OK")
</pallas_src>

<mosaic_0001>
module attributes {stable_mosaic.version = 11 : i64} {
  func.func @_time_embed_kernel(%arg0: memref<2x32xf32, #tpu.memory_space<vmem>>, %arg1: memref<32x128xf32, #tpu.memory_space<vmem>>, %arg2: memref<1x128xf32, #tpu.memory_space<vmem>>, %arg3: memref<128x128xf32, #tpu.memory_space<vmem>>, %arg4: memref<1x128xf32, #tpu.memory_space<vmem>>, %arg5: memref<2x64xf32, #tpu.memory_space<vmem>>) attributes {dimension_semantics = [], scalar_prefetch = 0 : i64, scratch_operands = 0 : i64, tpu.core_type = #tpu.core_type<tc>} {
    %c0 = arith.constant 0 : index
    %c0_0 = arith.constant 0 : index
    %0 = vector.load %arg0[%c0, %c0_0] : memref<2x32xf32, #tpu.memory_space<vmem>>, vector<2x32xf32>
    %c0_1 = arith.constant 0 : index
    %c0_2 = arith.constant 0 : index
    %1 = vector.load %arg1[%c0_1, %c0_2] : memref<32x128xf32, #tpu.memory_space<vmem>>, vector<32x128xf32>
    %cst = arith.constant dense<0.000000e+00> : vector<2x128xf32>
    %2 = tpu.matmul %0, %1, %cst {dimension_numbers = #tpu.dot_dimension_numbers<[1], [0], [0], [1], [0, 0, 1, 1], [], []>} : vector<2x32xf32>, vector<32x128xf32>, vector<2x128xf32> -> vector<2x128xf32>
    %c0_3 = arith.constant 0 : index
    %c0_4 = arith.constant 0 : index
    %3 = vector.load %arg2[%c0_3, %c0_4] : memref<1x128xf32, #tpu.memory_space<vmem>>, vector<1x128xf32>
    %4 = vector.broadcast %3 : vector<1x128xf32> to vector<2x128xf32>
    %5 = arith.addf %2, %4 : vector<2x128xf32>
    %6 = arith.negf %5 : vector<2x128xf32>
    %7 = math.exp %6 : vector<2x128xf32>
    %cst_5 = arith.constant 1.000000e+00 : f32
    %8 = vector.broadcast %cst_5 : f32 to vector<2x128xf32>
    %9 = arith.addf %8, %7 : vector<2x128xf32>
    %10 = arith.divf %8, %9 : vector<2x128xf32>
    %11 = arith.mulf %5, %10 : vector<2x128xf32>
    %c0_6 = arith.constant 0 : index
    %c0_7 = arith.constant 0 : index
    %12 = vector.load %arg3[%c0_6, %c0_7] : memref<128x128xf32, #tpu.memory_space<vmem>>, vector<128x128xf32>
    %cst_8 = arith.constant dense<0.000000e+00> : vector<2x128xf32>
    %13 = tpu.matmul %11, %12, %cst_8 {dimension_numbers = #tpu.dot_dimension_numbers<[1], [0], [0], [1], [0, 0, 1, 1], [], []>} : vector<2x128xf32>, vector<128x128xf32>, vector<2x128xf32> -> vector<2x128xf32>
    %c0_9 = arith.constant 0 : index
    %c0_10 = arith.constant 0 : index
    %14 = vector.load %arg4[%c0_9, %c0_10] : memref<1x128xf32, #tpu.memory_space<vmem>>, vector<1x128xf32>
    %15 = vector.broadcast %14 : vector<1x128xf32> to vector<2x128xf32>
    %16 = arith.addf %13, %15 : vector<2x128xf32>
    %17 = vector.extract_strided_slice %16 {offsets = [0, 0], sizes = [2, 64], strides = [1, 1]} : vector<2x128xf32> to vector<2x64xf32>
    %c0_11 = arith.constant 0 : index
    %c0_12 = arith.constant 0 : index
    %18 = vector.load %arg5[%c0_11, %c0_12] : memref<2x64xf32, #tpu.memory_space<vmem>>, vector<2x64xf32>
    tpu.vector_store %arg5[%c0_11, %c0_12], %17 {strides = array<i32>} : memref<2x64xf32, #tpu.memory_space<vmem>>, vector<2x64xf32>,
    return
  }
}

</mosaic_0001>

<llo_original>
// kernel: tpu_custom_call.1
$region0: #{tpu_custom_call.1}
  #allocation0 [shape = 'u32[]', space=smem, size = 0x4, offset = 0x4, fixed_abs, tag = 'smem constant byte address 0x4 - core index']
  #allocation1 [shape = 'u32[144,128]{1,0:T(1,128)}', space=vmem, size = 0x12000, scoped, tag = 'internal scratch']
  %s0 = inlined_call_operand.hbm [shape: f32[2,32], index: 0, kind: input, shape index: {}]
  %s1 = inlined_call_operand.hbm [shape: f32[32,128], index: 1, kind: input, shape index: {}]
  %s2 = inlined_call_operand.vmem [shape: f32[1,128], index: 2, kind: input, shape index: {}]
  %s3 = inlined_call_operand.hbm [shape: f32[128,128], index: 3, kind: input, shape index: {}]
  %s4 = inlined_call_operand.vmem [shape: f32[1,128], index: 4, kind: input, shape index: {}]
  %s5 = inlined_call_operand.hbm [shape: f32[2,64], index: 5, kind: output, shape index: {}]
  %s6 = sld [smem:[#allocation0]]
  $region42: #{tpu_custom_call.1} parent=0
    _
  %s8 = ssub.s32 1, %s6
  %s9 = scalar_select 0, %s8, %s6
  $region1: #{tpu_custom_call.1} parent=0
    #allocation2 [shape = 'u8[1024]{0}', space=vmem, size = 0x400, scoped, tag = 'input window, operand 0, single buffered']
    #allocation3 [shape = 's32[1]{0}', space=sflag, size = 0x4, scoped, tag = 'scoped memory for tpu_custom_call.1']
    #allocation4 [shape = 's32[1]{0}', space=sflag, size = 0x4, scoped, tag = 'scoped memory for tpu_custom_call.1']
    #allocation5 [shape = 'u8[16384]{0}', space=vmem, size = 0x4000, scoped, tag = 'input window, operand 1, single buffered']
    #allocation6 [shape = 's32[1]{0}', space=sflag, size = 0x4, scoped, tag = 'scoped memory for tpu_custom_call.1']
    #allocation7 [shape = 'u8[65536]{0}', space=vmem, size = 0x10000, scoped, tag = 'input window, operand 3, single buffered']
    #allocation8 [shape = 'u8[1024]{0}', space=vmem, size = 0x400, scoped, tag = 'output window, operand 0, single buffered']
    %10 = vsyncpa [#allocation3], 0
    %11 = vsyncpa [#allocation6], 0
    %12 = vsyncpa [#allocation4], 0
    // Predicated region
    $region2: #{tpu_custom_call.1} parent=1 // pred_check
      _
    $region3: #{tpu_custom_call.1} parent=1 // pred_check_branch
      %14 = sbr.rel (0) target = $region5
    $region4: #{tpu_custom_call.1} parent=1 // pred_region
      %s16 = ssub.s32 32, 32
      %17 = vsyncadd [#allocation3], %s16
      %s19 = sshll.u32 [#allocation2], 4
      %s20 = int_to_ptr.vmem [resolvable:$true] %s19
      %22 = dma.hbm_to_vmem [thread:$0]  %s0, 32, %s20, [#allocation3]
    $region5: #{tpu_custom_call.1} parent=1 // pred_fallthru
      _
    // Predicated region
    $region6: #{tpu_custom_call.1} parent=1 // pred_check
      _
    $region7: #{tpu_custom_call.1} parent=1 // pred_check_branch
      %24 = sbr.rel (0) target = $region9
    $region8: #{tpu_custom_call.1} parent=1 // pred_region
      %s26 = ssub.s32 512, 512
      %27 = vsyncadd [#allocation6], %s26
      %s28 = sshll.u32 [#allocation5], 4
      %s29 = int_to_ptr.vmem [resolvable:$true] %s28
      %34 = dma.hbm_to_vmem [thread:$0]  %s1, 512, %s29, [#allocation6], 128, 128, 8
    $region9: #{tpu_custom_call.1} parent=1 // pred_fallthru
      _
    // Predicated region
    $region10: #{tpu_custom_call.1} parent=1 // pred_check
      _
    $region11: #{tpu_custom_call.1} parent=1 // pred_check_branch
      %36 = sbr.rel (0) target = $region13
    $region12: #{tpu_custom_call.1} parent=1 // pred_region
      _
    $region13: #{tpu_custom_call.1} parent=1 // pred_fallthru
      _
    // Predicated region
    $region14: #{tpu_custom_call.1} parent=1 // pred_check
      _
    $region15: #{tpu_custom_call.1} parent=1 // pred_check_branch
      %38 = sbr.rel (0) target = $region17
    $region16: #{tpu_custom_call.1} parent=1 // pred_region
      %s40 = ssub.s32 2048, 2048
      %41 = vsyncadd [#allocation6], %s40
      %s42 = sshll.u32 [#allocation7], 4
      %s43 = int_to_ptr.vmem [resolvable:$true] %s42
      %48 = dma.hbm_to_vmem [thread:$0]  %s3, 2048, %s43, [#allocation6], 128, 128, 8
    $region17: #{tpu_custom_call.1} parent=1 // pred_fallthru
      _
    // Predicated region
    $region18: #{tpu_custom_call.1} parent=1 // pred_check
      _
    $region19: #{tpu_custom_call.1} parent=1 // pred_check_branch
      %50 = sbr.rel (0) target = $region21
    $region20: #{tpu_custom_call.1} parent=1 // pred_region
      _
    $region21: #{tpu_custom_call.1} parent=1 // pred_fallthru
      _
    // Predicated region
    $region22: #{tpu_custom_call.1} parent=1 // pred_check
      _
    $region23: #{tpu_custom_call.1} parent=1 // pred_check_branch
      %52 = sbr.rel (0) target = $region25
    $region24: #{tpu_custom_call.1} parent=1 // pred_region
      %53 = dma.done [#allocation3], 32
    $region25: #{tpu_custom_call.1} parent=1 // pred_fallthru
      _
    // Predicated region
    $region26: #{tpu_custom_call.1} parent=1 // pred_check
      _
    $region27: #{tpu_custom_call.1} parent=1 // pred_check_branch
      %55 = sbr.rel (0) target = $region29
    $region28: #{tpu_custom_call.1} parent=1 // pred_region
      %56 = dma.done [#allocation6], 512
    $region29: #{tpu_custom_call.1} parent=1 // pred_fallthru
      _
    // Predicated region
    $region30: #{tpu_custom_call.1} parent=1 // pred_check
      _
    $region31: #{tpu_custom_call.1} parent=1 // pred_check_branch
      %58 = sbr.rel (0) target = $region33
    $region32: #{tpu_custom_call.1} parent=1 // pred_region
      %59 = dma.done [#allocation6], 2048
    $region33: #{tpu_custom_call.1} parent=1 // pred_fallthru
      _
    %v60 = vld [vmem:[#allocation2] sm:$0x3]
    %v61 = vld [vmem:[#allocation5] sm:$0xff]
    %v62 = vld [vmem:[#allocation5 + $0x8] sm:$0xff]
    %v63 = vld [vmem:[#allocation5 + $0x10] sm:$0xff]
    %v64 = vld [vmem:[#allocation5 + $0x18] sm:$0xff]
    %v65 = vld [vmem:[%s2] sm:$0x1]
    %v67 = vlaneseq
    %v68 = vshrl.u32 %v67, 7
    %v69 = vsub.s32 0, %v68
    %v70 = vrot.slane %v65, %v69
    %vm72 = vcmask 261120
    %v74 = vsel %vm72, %v60, 0
    %76 = vmatprep.subr.mxu0 0.0
    %77 = vmatpush1.msra.mxu0 %v61
    %78 = vmatprep.subr.mxu0 0.0
    %79 = vmatpush1.msra.mxu0 %v62
    %80 = vmatprep.subr.mxu0 0.0
    %81 = vmatpush1.msra.mxu0 %v63
    %82 = vmatprep.subr.mxu0 0.0
    %83 = vmatpush1.msra.mxu0 %v64
    %84 = vmatprep.subr.mxu0 0.0
    %85 = vmatpush1.msra.mxu0 0.0
    %86 = vmatprep.subr.mxu0 0.0
    %87 = vmatpush1.msra.mxu0 0.0
    %88 = vmatprep.subr.mxu0 0.0
    %89 = vmatpush1.msra.mxu0 0.0
    %90 = vmatprep.subr.mxu0 0.0
    %91 = vmatpush1.msra.mxu0 0.0
    %92 = vmatprep.subr.mxu0 0.0
    %93 = vmatpush1.msra.mxu0 0.0
    %94 = vmatprep.subr.mxu0 0.0
    %95 = vmatpush1.msra.mxu0 0.0
    %96 = vmatprep.subr.mxu0 0.0
    %97 = vmatpush1.msra.mxu0 0.0
    %98 = vmatprep.subr.mxu0 0.0
    %99 = vmatpush1.msra.mxu0 0.0
    %100 = vmatprep.subr.mxu0 0.0
    %101 = vmatpush1.msra.mxu0 0.0
    %102 = vmatprep.subr.mxu0 0.0
    %103 = vmatpush1.msra.mxu0 0.0
    %104 = vmatprep.subr.mxu0 0.0
    %105 = vmatpush1.msra.mxu0 0.0
    %106 = vmatprep.subr.mxu0 0.0
    %107 = vmatpush1.msra.mxu0 0.0
    %108 = vmatprep.subr.mxu0 0.0
    %109 = vmatpush1.msra.mxu0 0.0
    %110 = vmatprep.subr.mxu0 0.0
    %111 = vmatpush1.msra.mxu0 0.0
    %112 = vmatprep.subr.mxu0 0.0
    %113 = vmatpush1.msra.mxu0 0.0
    %114 = vmatprep.subr.mxu0 0.0
    %115 = vmatpush1.msra.mxu0 0.0
    %116 = vmatprep.subr.mxu0 0.0
    %117 = vmatpush1.msra.mxu0 0.0
    %118 = vmatprep.subr.mxu0 0.0
    %119 = vmatpush1.msra.mxu0 0.0
    %120 = vmatprep.subr.mxu0 0.0
    %121 = vmatpush1.msra.mxu0 0.0
    %122 = vmatprep.subr.mxu0 0.0
    %123 = vmatpush1.msra.mxu0 0.0
    %124 = vmatprep.subr.mxu0 0.0
    %125 = vmatpush1.msra.mxu0 0.0
    %126 = vmatprep.subr.mxu0 0.0
    %127 = vmatpush1.msra.mxu0 0.0
    %128 = vmatprep.subr.mxu0 0.0
    %129 = vmatpush1.msra.mxu0 0.0
    %130 = vmatprep.subr.mxu0 0.0
    %131 = vmatpush1.msra.mxu0 0.0
    %132 = vmatprep.subr.mxu0 0.0
    %133 = vmatpush1.msra.mxu0 0.0
    %134 = vmatprep.subr.mxu0 0.0
    %135 = vmatpush1.msra.mxu0 0.0
    %136 = vmatprep.subr.mxu0 0.0
    %137 = vmatpush1.msra.mxu0 0.0
    %138 = vmatprep.subr.mxu0 0.0
    %139 = vmatpush1.msra.mxu0 0.0
    %140 = vmatprep.mubr.f32.mxu0 0.0
    %141 = vmatmul.mubr.f32.gmra.mrb[0].mxu0 %v74
    %v142 = vpop.f32.mrb[0].mxu0
    %v143 = vadd.f32 %v70, %v142
    %v144 = vpop.f32.mrb[0].mxu0
    %145 = vdwg.mxu0
    %v146 = vxor.u32 %v143, 2147483648
    %v147 = vmul.f32 %v146, 1.442695
    %v148 = vpow.pop %v147
    %v149 = vadd.f32 %v148, 1.0
    %v150 = vrcp.pop %v149
    %v151 = vmul.f32 1.0, %v150
    %v152 = vmul.f32 %v143, %v151
    %v153 = vld [vmem:[#allocation7] sm:$0xff]
    %v154 = vld [vmem:[#allocation7 + $0x8] sm:$0xff]
    %v155 = vld [vmem:[#allocation7 + $0x10] sm:$0xff]
    %v156 = vld [vmem:[#allocation7 + $0x18] sm:$0xff]
    %v157 = vld [vmem:[#allocation7 + $0x20] sm:$0xff]
    %v158 = vld [vmem:[#allocation7 + $0x28] sm:$0xff]
    %v159 = vld [vmem:[#allocation7 + $0x30] sm:$0xff]
    %v160 = vld [vmem:[#allocation7 + $0x38] sm:$0xff]
    %v161 = vld [vmem:[#allocation7 + $0x40] sm:$0xff]
    %v162 = vld [vmem:[#allocation7 + $0x48] sm:$0xff]
    %v163 = vld [vmem:[#allocation7 + $0x50] sm:$0xff]
    %v164 = vld [vmem:[#allocation7 + $0x58] sm:$0xff]
    %v165 = vld [vmem:[#allocation7 + $0x60] sm:$0xff]
    %v166 = vld [vmem:[#allocation7 + $0x68] sm:$0xff]
    %v167 = vld [vmem:[#allocation7 + $0x70] sm:$0xff]
    %v168 = vld [vmem:[#allocation7 + $0x78] sm:$0xff]
    %v169 = vld [vmem:[%s4] sm:$0x1]
    %v171 = vlaneseq
    %v172 = vshrl.u32 %v171, 7
    %v173 = vsub.s32 0, %v172
    %v174 = vrot.slane %v169, %v173
    %176 = vmatprep.subr.mxu0 0.0
    %177 = vmatpush1.msra.mxu0 %v153
    %178 = vmatprep.subr.mxu0 0.0
    %179 = vmatpush1.msra.mxu0 %v154
    %180 = vmatprep.subr.mxu0 0.0
    %181 = vmatpush1.msra.mxu0 %v155
    %182 = vmatprep.subr.mxu0 0.0
    %183 = vmatpush1.msra.mxu0 %v156
    %184 = vmatprep.subr.mxu0 0.0
    %185 = vmatpush1.msra.mxu0 %v157
    %186 = vmatprep.subr.mxu0 0.0
    %187 = vmatpush1.msra.mxu0 %v158
    %188 = vmatprep.subr.mxu0 0.0
    %189 = vmatpush1.msra.mxu0 %v159
    %190 = vmatprep.subr.mxu0 0.0
    %191 = vmatpush1.msra.mxu0 %v160
    %192 = vmatprep.subr.mxu0 0.0
    %193 = vmatpush1.msra.mxu0 %v161
    %194 = vmatprep.subr.mxu0 0.0
    %195 = vmatpush1.msra.mxu0 %v162
    %196 = vmatprep.subr.mxu0 0.0
    %197 = vmatpush1.msra.mxu0 %v163
    %198 = vmatprep.subr.mxu0 0.0
    %199 = vmatpush1.msra.mxu0 %v164
    %200 = vmatprep.subr.mxu0 0.0
    %201 = vmatpush1.msra.mxu0 %v165
    %202 = vmatprep.subr.mxu0 0.0
    %203 = vmatpush1.msra.mxu0 %v166
    %204 = vmatprep.subr.mxu0 0.0
    %205 = vmatpush1.msra.mxu0 %v167
    %206 = vmatprep.subr.mxu0 0.0
    %207 = vmatpush1.msra.mxu0 %v168
    %208 = vmatprep.subr.mxu0 0.0
    %209 = vmatpush1.msra.mxu0 0.0
    %210 = vmatprep.subr.mxu0 0.0
    %211 = vmatpush1.msra.mxu0 0.0
    %212 = vmatprep.subr.mxu0 0.0
    %213 = vmatpush1.msra.mxu0 0.0
    %214 = vmatprep.subr.mxu0 0.0
    %215 = vmatpush1.msra.mxu0 0.0
    %216 = vmatprep.subr.mxu0 0.0
    %217 = vmatpush1.msra.mxu0 0.0
    %218 = vmatprep.subr.mxu0 0.0
    %219 = vmatpush1.msra.mxu0 0.0
    %220 = vmatprep.subr.mxu0 0.0
    %221 = vmatpush1.msra.mxu0 0.0
    %222 = vmatprep.subr.mxu0 0.0
    %223 = vmatpush1.msra.mxu0 0.0
    %224 = vmatprep.subr.mxu0 0.0
    %225 = vmatpush1.msra.mxu0 0.0
    %226 = vmatprep.subr.mxu0 0.0
    %227 = vmatpush1.msra.mxu0 0.0
    %228 = vmatprep.subr.mxu0 0.0
    %229 = vmatpush1.msra.mxu0 0.0
    %230 = vmatprep.subr.mxu0 0.0
    %231 = vmatpush1.msra.mxu0 0.0
    %232 = vmatprep.subr.mxu0 0.0
    %233 = vmatpush1.msra.mxu0 0.0
    %234 = vmatprep.subr.mxu0 0.0
    %235 = vmatpush1.msra.mxu0 0.0
    %236 = vmatprep.subr.mxu0 0.0
    %237 = vmatpush1.msra.mxu0 0.0
    %238 = vmatprep.subr.mxu0 0.0
    %239 = vmatpush1.msra.mxu0 0.0
    %240 = vmatprep.mubr.f32.mxu0 0.0
    %241 = vmatmul.mubr.f32.gmra.mrb[0].mxu0 %v152
    %v242 = vpop.f32.mrb[0].mxu0
    %v243 = vadd.f32 %v174, %v242
    %v244 = vpop.f32.mrb[0].mxu0
    %245 = vdwg.mxu0
    %vm246 = vcmask 517120
    %247 = vst.msk [vmem:[#allocation8] sm:$0x3] %vm246, %v243
    // Predicated region
    $region34: #{tpu_custom_call.1} parent=1 // pred_check
      _
    $region35: #{tpu_custom_call.1} parent=1 // pred_check_branch
      %249 = sbr.rel (0) target = $region37
    $region36: #{tpu_custom_call.1} parent=1 // pred_region
      %s251 = ssub.s32 32, 32
      %252 = vsyncadd [#allocation4], %s251
      %s254 = sshll.u32 [#allocation8], 4
      %s255 = int_to_ptr.vmem [resolvable:$true] %s254
      %257 = dma.vmem_to_hbm [thread:$0]  %s255, 32, %s5, [#allocation4]
    $region37: #{tpu_custom_call.1} parent=1 // pred_fallthru
      _
    // Predicated region
    $region38: #{tpu_custom_call.1} parent=1 // pred_check
      _
    $region39: #{tpu_custom_call.1} parent=1 // pred_check_branch
      %259 = sbr.rel (0) target = $region41
    $region40: #{tpu_custom_call.1} parent=1 // pred_region
      %260 = dma.done [#allocation4], 32
    $region41: #{tpu_custom_call.1} parent=1 // pred_fallthru
      _
    %261 = vsyncpa [#allocation3], 1
    %262 = vsyncpa [#allocation6], 1
    %263 = vsyncpa [#allocation4], 1

</llo_original>
